<compile_context>
chip_gen: v5e
topology: v5e:2x2
jax: 0.10.0
libtpu: 0.0.40
codegen_flags: <defaults>
</compile_context>

<pallas_src>
import functools

import jax
import jax.numpy as jnp
from jax.experimental import pallas as pl
from jax.experimental.pallas import tpu as pltpu


def _vmem_limit_bytes():
    """Generation-aware scoped-VMEM limit: ~3/4 of physical (48 MiB on v7x, 96 on v5e/v6e)."""
    cap = 64 * 1024 * 1024
    try:
        info = pltpu.get_tpu_info()
        cap = getattr(info, "vmem_capacity_bytes", None) or cap
    except Exception:
        pass
    return min(int(cap * 3 // 4), 96 * 1024 * 1024)


VMEM_LIMIT = _vmem_limit_bytes()


def _pick_tile(dim, pref, align):
    """Largest multiple of `align` that divides `dim` and is <= pref.

    Falls back to the full dim (always legal: a block equal to the array dim satisfies the
    (8,128) rule) only when no aligned divisor exists — never silently for a misaligned pref.
    """
    t = min(pref, dim)
    t -= t % align
    while t >= align:
        if dim % t == 0:
            return t
        t -= align
    return dim


# ----------------------------- dense (tiled GEMM + bias + act) -----------------------------

def _dense_kernel(x_ref, w_ref, b_ref, o_ref, acc_ref, *, act):
    @pl.when(pl.program_id(2) == 0)
    def _init():
        acc_ref[...] = jnp.zeros_like(acc_ref)

    acc_ref[...] += jnp.dot(x_ref[...], w_ref[...],
                            preferred_element_type=jnp.float32)

    @pl.when(pl.program_id(2) == pl.num_programs(2) - 1)
    def _finalize():
        y = acc_ref[...] + b_ref[...].astype(jnp.float32)
        if act == "gelu":
            # TODO(synk): HF BERT default gelu is the exact erf form; tanh approximation
            #             is used here (guaranteed Mosaic lowering, tiny numeric delta).
            y = jax.nn.gelu(y, approximate=True)
        o_ref[...] = y.astype(o_ref.dtype)


def dense(x, w, b, act="none", out_dtype=None, *, tm=512, tn=512, tk=1024):
    """y = act(x @ w + b) with (tm, tn, tk) tiling, f32 VMEM accumulator, K last axis."""
    M, K = x.shape
    Kw, N = w.shape
    assert K == Kw
    out_dtype = out_dtype or x.dtype
    tm = _pick_tile(M, tm, 8)
    tn = _pick_tile(N, tn, 128)
    tk = _pick_tile(K, tk, 128)
    # Leading (largest, M/tm) axis is parallel first so v7x's 2 TensorCores shard it evenly.
    grid = (M // tm, N // tn, K // tk)
    kern = functools.partial(_dense_kernel, act=act)
    return pl.pallas_call(
        kern,
        grid=grid,
        in_specs=[
            pl.BlockSpec((tm, tk), lambda i, j, k: (i, k)),
            pl.BlockSpec((tk, tn), lambda i, j, k: (k, j)),
            pl.BlockSpec((1, tn), lambda i, j, k: (0, j)),
        ],
        out_specs=pl.BlockSpec((tm, tn), lambda i, j, k: (i, j)),
        out_shape=jax.ShapeDtypeStruct((M, N), out_dtype),
        scratch_shapes=[pltpu.VMEM((tm, tn), jnp.float32)],
        compiler_params=pltpu.CompilerParams(
            dimension_semantics=("parallel", "parallel", "arbitrary"),
            vmem_limit_bytes=VMEM_LIMIT),
    )(x, w, b.reshape(1, N))


# ------------------- dense + bias + residual-add + layernorm (fused epilogue) -------------------

def _dense_res_ln_kernel(x_ref, w_ref, b_ref, r_ref, g_ref, bln_ref, o_ref, acc_ref, *, eps):
    @pl.when(pl.program_id(1) == 0)
    def _init():
        acc_ref[...] = jnp.zeros_like(acc_ref)

    acc_ref[...] += jnp.dot(x_ref[...], w_ref[...],
                            preferred_element_type=jnp.float32)

    @pl.when(pl.program_id(1) == pl.num_programs(1) - 1)
    def _finalize():
        # Full-row (tn == H) finalize: bias + residual + LayerNorm, all in f32.
        y = (acc_ref[...] + b_ref[...].astype(jnp.float32)
             + r_ref[...].astype(jnp.float32))
        mu = jnp.mean(y, axis=-1, keepdims=True)
        yc = y - mu
        var = jnp.mean(yc * yc, axis=-1, keepdims=True)
        yn = yc * jax.lax.rsqrt(var + eps)
        o_ref[...] = (yn * g_ref[...].astype(jnp.float32)
                      + bln_ref[...].astype(jnp.float32)).astype(o_ref.dtype)


def dense_residual_layernorm(x, w, b, residual, gamma, beta, out_dtype=None, *,
                             tm=512, tk=1024, eps=1e-12):
    """LayerNorm(residual + x @ w + b) — N is kept whole (tn == H) so LN sees full rows."""
    M, K = x.shape
    Kw, N = w.shape
    assert K == Kw and residual.shape == (M, N)
    out_dtype = out_dtype or residual.dtype
    tm = _pick_tile(M, tm, 8)
    tk = _pick_tile(K, tk, 128)
    grid = (M // tm, K // tk)
    return pl.pallas_call(
        functools.partial(_dense_res_ln_kernel, eps=eps),
        grid=grid,
        in_specs=[
            pl.BlockSpec((tm, tk), lambda i, k: (i, k)),
            pl.BlockSpec((tk, N), lambda i, k: (k, 0)),
            pl.BlockSpec((1, N), lambda i, k: (0, 0)),
            pl.BlockSpec((tm, N), lambda i, k: (i, 0)),   # residual: resident across k
            pl.BlockSpec((1, N), lambda i, k: (0, 0)),
            pl.BlockSpec((1, N), lambda i, k: (0, 0)),
        ],
        out_specs=pl.BlockSpec((tm, N), lambda i, k: (i, 0)),
        out_shape=jax.ShapeDtypeStruct((M, N), out_dtype),
        scratch_shapes=[pltpu.VMEM((tm, N), jnp.float32)],
        compiler_params=pltpu.CompilerParams(
            dimension_semantics=("parallel", "arbitrary"),
            vmem_limit_bytes=VMEM_LIMIT),
    )(x, w, b.reshape(1, N), residual, gamma.reshape(1, N), beta.reshape(1, N))


# ------------------- embedding add (word + pos + type) fused with LayerNorm -------------------

def _emb_ln_kernel(word_ref, pt_ref, g_ref, b_ref, o_ref, *, eps):
    x = word_ref[0].astype(jnp.float32) + pt_ref[...].astype(jnp.float32)
    mu = jnp.mean(x, axis=-1, keepdims=True)
    xc = x - mu
    var = jnp.mean(xc * xc, axis=-1, keepdims=True)
    y = xc * jax.lax.rsqrt(var + eps)
    o_ref[0] = (y * g_ref[...].astype(jnp.float32)
                + b_ref[...].astype(jnp.float32)).astype(o_ref.dtype)


def embed_layernorm(word, postype, gamma, beta, out_dtype=jnp.bfloat16, *, tm=512, eps=1e-12):
    """word: [B,S,H] f32 (gathered token embeddings), postype: [S,H] f32 (pos + type)."""
    B, S, H = word.shape
    tm = _pick_tile(S, tm, 8)
    grid = (B, S // tm)
    return pl.pallas_call(
        functools.partial(_emb_ln_kernel, eps=eps),
        grid=grid,
        in_specs=[
            pl.BlockSpec((1, tm, H), lambda b, si: (b, si, 0)),
            pl.BlockSpec((tm, H), lambda b, si: (si, 0)),
            pl.BlockSpec((1, H), lambda b, si: (0, 0)),
            pl.BlockSpec((1, H), lambda b, si: (0, 0)),
        ],
        out_specs=pl.BlockSpec((1, tm, H), lambda b, si: (b, si, 0)),
        out_shape=jax.ShapeDtypeStruct((B, S, H), out_dtype),
        compiler_params=pltpu.CompilerParams(
            dimension_semantics=("parallel", "parallel"),
            vmem_limit_bytes=VMEM_LIMIT),
    )(word, postype, gamma.reshape(1, H), beta.reshape(1, H))


# ----------------------------- flash attention (heads sliced via BlockSpec) -----------------------------

def _flash_attn_kernel(q_ref, k_ref, v_ref, bias_ref, o_ref, m_sc, l_sc, acc_sc, *, sm_scale):
    ki = pl.program_id(3)

    @pl.when(ki == 0)
    def _init():
        m_sc[...] = jnp.full_like(m_sc, -jnp.inf)
        l_sc[...] = jnp.zeros_like(l_sc)
        acc_sc[...] = jnp.zeros_like(acc_sc)

    q = q_ref[0]                                          # [tq, dh] bf16
    k = k_ref[0]                                          # [tk, dh] bf16
    s = jax.lax.dot_general(q, k, (((1,), (1,)), ((), ())),
                            preferred_element_type=jnp.float32)   # [tq, tk] f32
    s = s * sm_scale + bias_ref[0]                        # scale in f32 + additive mask [1, tk]

    m_prev = m_sc[...]
    m_new = jnp.maximum(m_prev, jnp.max(s, axis=-1, keepdims=True))
    alpha = jnp.exp(m_prev - m_new)
    p = jnp.exp(s - m_new)
    l_sc[...] = alpha * l_sc[...] + jnp.sum(p, axis=-1, keepdims=True)
    acc_sc[...] = alpha * acc_sc[...] + jnp.dot(
        p.astype(v_ref.dtype), v_ref[0], preferred_element_type=jnp.float32)
    m_sc[...] = m_new

    @pl.when(ki == pl.num_programs(3) - 1)
    def _finalize():
        o_ref[0] = (acc_sc[...] / l_sc[...]).astype(o_ref.dtype)   # exact normalization


def flash_attention(qkv, mask_bias, n_heads, head_dim, sm_scale, *, tq=256, tk=None):
    """qkv: [B, S, 3H] (q | k | v, heads contiguous along H); mask_bias: [B, 1, S] (0 / -10000).

    Returns context in [B, S, H] layout (heads already merged).  KV tile defaults to the full
    sequence, so K/V are fetched from HBM once per (batch, head) and the kv grid axis is 1."""
    B, S, threeH = qkv.shape
    H = threeH // 3
    assert H == n_heads * head_dim
    tq = _pick_tile(S, tq, 8)
    tk = S if tk is None else _pick_tile(S, tk, 128)
    nH = n_heads
    q_spec = pl.BlockSpec((1, tq, head_dim), lambda b, h, qi, ki: (b, qi, h))
    k_spec = pl.BlockSpec((1, tk, head_dim), lambda b, h, qi, ki: (b, ki, nH + h))
    v_spec = pl.BlockSpec((1, tk, head_dim), lambda b, h, qi, ki: (b, ki, 2 * nH + h))
    bias_spec = pl.BlockSpec((1, 1, tk), lambda b, h, qi, ki: (b, 0, ki))
    out_spec = pl.BlockSpec((1, tq, head_dim), lambda b, h, qi, ki: (b, qi, h))
    kern = functools.partial(_flash_attn_kernel, sm_scale=sm_scale)
    return pl.pallas_call(
        kern,
        grid=(B, nH, S // tq, S // tk),
        in_specs=[q_spec, k_spec, v_spec, bias_spec],
        out_specs=out_spec,
        out_shape=jax.ShapeDtypeStruct((B, S, H), qkv.dtype),
        scratch_shapes=[pltpu.VMEM((tq, 1), jnp.float32),
                        pltpu.VMEM((tq, 1), jnp.float32),
                        pltpu.VMEM((tq, head_dim), jnp.float32)],
        compiler_params=pltpu.CompilerParams(
            dimension_semantics=("parallel", "parallel", "parallel", "arbitrary"),
            vmem_limit_bytes=VMEM_LIMIT),
    )(qkv, qkv, qkv, mask_bias)


# ------------------- pooler (tanh) + dropout + classifier head, one tiny kernel -------------------

def _pooler_head_kernel(cls_ref, wp_ref, bp_ref, wo_ref, bo_ref, o_ref):
    pooled = jnp.tanh(
        jnp.dot(cls_ref[...], wp_ref[...], preferred_element_type=jnp.float32)
        + bp_ref[...].astype(jnp.float32))
    # TODO(synk): nn.Dropout(p=0.3) is identity in eval mode; training-mode parity would mask
    #             `pooled` here with pltpu.prng_seed / pltpu.prng_random_bits.
    o_ref[...] = (jnp.dot(pooled.astype(wo_ref.dtype), wo_ref[...],
                          preferred_element_type=jnp.float32)
                  + bo_ref[...].astype(jnp.float32)).astype(o_ref.dtype)


def pooler_classifier_head(cls, pool_w, pool_b, out_w, out_b):
    """logits = (tanh(cls @ Wp + bp)) @ Wo + bo — M = batch is tiny, so one fused launch."""
    B, H = cls.shape
    _, Np = out_w.shape
    return pl.pallas_call(
        _pooler_head_kernel,
        grid=(1,),
        in_specs=[
            pl.BlockSpec((B, H), lambda i: (0, 0)),
            pl.BlockSpec((H, H), lambda i: (0, 0)),
            pl.BlockSpec((1, H), lambda i: (0, 0)),
            pl.BlockSpec((H, Np), lambda i: (0, 0)),
            pl.BlockSpec((1, Np), lambda i: (0, 0)),
        ],
        out_specs=pl.BlockSpec((B, Np), lambda i: (0, 0)),
        out_shape=jax.ShapeDtypeStruct((B, Np), jnp.float32),
        compiler_params=pltpu.CompilerParams(vmem_limit_bytes=VMEM_LIMIT),
    )(cls, pool_w, pool_b.reshape(1, H), out_w, out_b.reshape(1, Np))


# ----------------------------- model (glue in JAX) -----------------------------

def init_params(key, cfg):
    H, I, nL = cfg["hidden"], cfg["intermediate"], cfg["layers"]
    V, P = cfg["vocab"], cfg["max_pos"]
    nC, nCp = cfg["n_classes"], cfg["n_classes_padded"]

    def nrm(k, shape):
        return 0.02 * jax.random.normal(k, shape, dtype=jnp.float32)

    keys = jax.random.split(key, 8 + nL)
    params = {
        "word_emb": nrm(keys[0], (V, H)),
        "pos_emb": nrm(keys[1], (P, H)),
        "type_emb": nrm(keys[2], (2, H)),
        "emb_ln_g": jnp.ones((H,), jnp.float32),
        "emb_ln_b": jnp.zeros((H,), jnp.float32),
        "pool_w": nrm(keys[3], (H, H)).astype(jnp.bfloat16),
        "pool_b": jnp.zeros((H,), jnp.float32),
        # classifier head (nn.Linear(hidden, n_classes)), padded to 128 lanes; slice in wrapper
        "out_w": jnp.pad(nrm(keys[4], (H, nC)),
                         ((0, 0), (0, nCp - nC))).astype(jnp.bfloat16),
        "out_b": jnp.zeros((nCp,), jnp.float32),
        "layers": [],
    }
    for li in range(nL):
        lk = jax.random.split(keys[8 + li], 8)
        wq, wk, wv = nrm(lk[0], (H, H)), nrm(lk[1], (H, H)), nrm(lk[2], (H, H))
        params["layers"].append({
            # fused QKV projection (1/sqrt(dh) is applied to f32 scores inside the kernel)
            "wqkv": jnp.concatenate([wq, wk, wv], axis=1).astype(jnp.bfloat16),
            "bqkv": jnp.zeros((3 * H,), jnp.float32),
            "wo": nrm(lk[3], (H, H)).astype(jnp.bfloat16),
            "bo": jnp.zeros((H,), jnp.float32),
            "ln1_g": jnp.ones((H,), jnp.float32), "ln1_b": jnp.zeros((H,), jnp.float32),
            "w1": nrm(lk[4], (H, I)).astype(jnp.bfloat16), "b1": jnp.zeros((I,), jnp.float32),
            "w2": nrm(lk[5], (I, H)).astype(jnp.bfloat16), "b2": jnp.zeros((H,), jnp.float32),
            "ln2_g": jnp.ones((H,), jnp.float32), "ln2_b": jnp.zeros((H,), jnp.float32),
        })
    return params


def sentiment_classifier_forward(params, input_ids, attention_mask, cfg):
    B, S = input_ids.shape
    H, nH = cfg["hidden"], cfg["heads"]
    dh = H // nH
    sm_scale = 1.0 / (dh ** 0.5)

    # --- BERT embeddings: gather is glue; (word + pos + type) add is fused into the LN kernel ---
    word = jnp.take(params["word_emb"], input_ids, axis=0)              # [B,S,H] f32
    postype = params["pos_emb"][:S] + params["type_emb"][0][None, :]    # [S,H] f32 (tiny, XLA)
    x = embed_layernorm(word, postype, params["emb_ln_g"], params["emb_ln_b"],
                        out_dtype=jnp.bfloat16).reshape(B * S, H)       # [B*S,H] bf16

    # extended attention mask: (1 - mask) * -10000, shared over heads / query positions
    mask_bias = ((1.0 - attention_mask.astype(jnp.float32)) * -10000.0)[:, None, :]  # [B,1,S]

    # --- transformer encoder layers (all matmuls / softmax / LN in Pallas) ---
    for layer in params["layers"]:
        qkv = dense(x, layer["wqkv"], layer["bqkv"])                     # fused QKV: [B*S, 3H]
        ctx = flash_attention(qkv.reshape(B, S, 3 * H), mask_bias, nH, dh, sm_scale)  # [B,S,H]
        # attention output projection + residual + LayerNorm, fused in one kernel
        x = dense_residual_layernorm(ctx.reshape(B * S, H), layer["wo"], layer["bo"],
                                     residual=x, gamma=layer["ln1_g"], beta=layer["ln1_b"])
        ff = dense(x, layer["w1"], layer["b1"], act="gelu")
        # FFN2 + residual + LayerNorm, fused in one kernel
        x = dense_residual_layernorm(ff, layer["w2"], layer["b2"],
                                     residual=x, gamma=layer["ln2_g"], beta=layer["ln2_b"])

    # --- BERT pooler (tanh on token 0) + dropout (identity, eval) + classifier, one launch ---
    cls = x.reshape(B, S, H)[:, 0, :]                                    # [B, H] bf16
    logits_padded = pooler_classifier_head(cls, params["pool_w"], params["pool_b"],
                                           params["out_w"], params["out_b"])   # [B, 128] f32
    return logits_padded[:, :cfg["n_classes"]]


# ----------------------------- driver -----------------------------

if __name__ == "__main__":
    # Lane-friendly toy config: H and dh multiples of 128, S multiple of 128.
    cfg = dict(vocab=100, hidden=256, heads=2, layers=2, intermediate=512,
               max_pos=160, n_classes=3, n_classes_padded=128)
    B, S = 2, 128

    key = jax.random.PRNGKey(0)
    k_param, k_ids = jax.random.split(key)
    params = init_params(k_param, cfg)

    input_ids = jax.random.randint(k_ids, (B, S), 0, cfg["vocab"], dtype=jnp.int32)
    attention_mask = jnp.ones((B, S), dtype=jnp.int32).at[1, 96:].set(0)  # pad tail of row 1

    logits = sentiment_classifier_forward(params, input_ids, attention_mask, cfg)
    logits = jax.block_until_ready(logits)
    assert logits.shape == (B, cfg["n_classes"])
    assert bool(jnp.all(jnp.isfinite(logits)))
    print("KERNEL_OK")
</pallas_src>

<mosaic_0001>
module attributes {stable_mosaic.version = 11 : i64} {
  func.func @_emb_ln_kernel(%arg0: i32, %arg1: i32, %arg2: memref<1x128x256xf32, #tpu.memory_space<vmem>>, %arg3: memref<128x256xf32, #tpu.memory_space<vmem>>, %arg4: memref<1x256xf32, #tpu.memory_space<vmem>>, %arg5: memref<1x256xf32, #tpu.memory_space<vmem>>, %arg6: memref<1x128x256xbf16, #tpu.memory_space<vmem>>) attributes {dimension_semantics = [#tpu.dimension_semantics<parallel>, #tpu.dimension_semantics<parallel>], iteration_bounds = array<i64: 2, 1>, scalar_prefetch = 0 : i64, scratch_operands = 0 : i64, tpu.core_type = #tpu.core_type<tc>, window_params = [{transform_indices = @transform_0, window_bounds = array<i64: 1, 128, 256>}, {transform_indices = @transform_1, window_bounds = array<i64: 128, 256>}, {pipeline_mode = #tpu.pipeline_mode<synchronous>, transform_indices = @transform_2, window_bounds = array<i64: 1, 256>}, {pipeline_mode = #tpu.pipeline_mode<synchronous>, transform_indices = @transform_3, window_bounds = array<i64: 1, 256>}, {transform_indices = @transform_4, window_bounds = array<i64: 1, 128, 256>}]} {
    %c0 = arith.constant 0 : index
    %c0_0 = arith.constant 0 : index
    %c0_1 = arith.constant 0 : index
    %0 = vector.load %arg2[%c0, %c0_0, %c0_1] : memref<1x128x256xf32, #tpu.memory_space<vmem>>, vector<1x128x256xf32>
    %1 = vector.shape_cast %0 : vector<1x128x256xf32> to vector<128x256xf32>
    %c0_2 = arith.constant 0 : index
    %c0_3 = arith.constant 0 : index
    %2 = vector.load %arg3[%c0_2, %c0_3] : memref<128x256xf32, #tpu.memory_space<vmem>>, vector<128x256xf32>
    %3 = arith.addf %1, %2 : vector<128x256xf32>
    %cst = arith.constant dense<0.000000e+00> : vector<128xf32>
    %4 = vector.multi_reduction <add>, %3, %cst [1] : vector<128x256xf32> to vector<128xf32>
    %5 = vector.shape_cast %4 : vector<128xf32> to vector<128x1xf32>
    %cst_4 = arith.constant 2.560000e+02 : f32
    %6 = vector.broadcast %cst_4 : f32 to vector<128x1xf32>
    %7 = arith.divf %5, %6 : vector<128x1xf32>
    %8 = vector.broadcast %7 : vector<128x1xf32> to vector<128x256xf32>
    %9 = arith.subf %3, %8 : vector<128x256xf32>
    %10 = arith.mulf %9, %9 : vector<128x256xf32>
    %cst_5 = arith.constant dense<0.000000e+00> : vector<128xf32>
    %11 = vector.multi_reduction <add>, %10, %cst_5 [1] : vector<128x256xf32> to vector<128xf32>
    %12 = vector.shape_cast %11 : vector<128xf32> to vector<128x1xf32>
    %cst_6 = arith.constant 2.560000e+02 : f32
    %13 = vector.broadcast %cst_6 : f32 to vector<128x1xf32>
    %14 = arith.divf %12, %13 : vector<128x1xf32>
    %cst_7 = arith.constant 9.99999996E-13 : f32
    %15 = vector.broadcast %cst_7 : f32 to vector<128x1xf32>
    %16 = arith.addf %14, %15 : vector<128x1xf32>
    %17 = math.rsqrt %16 : vector<128x1xf32>
    %18 = vector.broadcast %17 : vector<128x1xf32> to vector<128x256xf32>
    %19 = arith.mulf %9, %18 : vector<128x256xf32>
    %c0_8 = arith.constant 0 : index
    %c0_9 = arith.constant 0 : index
    %20 = vector.load %arg4[%c0_8, %c0_9] : memref<1x256xf32, #tpu.memory_space<vmem>>, vector<1x256xf32>
    %21 = vector.broadcast %20 : vector<1x256xf32> to vector<128x256xf32>
    %22 = arith.mulf %19, %21 : vector<128x256xf32>
    %c0_10 = arith.constant 0 : index
    %c0_11 = arith.constant 0 : index
    %23 = vector.load %arg5[%c0_10, %c0_11] : memref<1x256xf32, #tpu.memory_space<vmem>>, vector<1x256xf32>
    %24 = vector.broadcast %23 : vector<1x256xf32> to vector<128x256xf32>
    %25 = arith.addf %22, %24 : vector<128x256xf32>
    %26 = arith.truncf %25 : vector<128x256xf32> to vector<128x256xbf16>
    %c0_12 = arith.constant 0 : index
    %c0_13 = arith.constant 0 : index
    %c0_14 = arith.constant 0 : index
    %27 = vector.load %arg6[%c0_12, %c0_13, %c0_14] : memref<1x128x256xbf16, #tpu.memory_space<vmem>>, vector<1x128x256xbf16>
    %28 = vector.shape_cast %27 : vector<1x128x256xbf16> to vector<128x256xbf16>
    %29 = vector.shape_cast %26 : vector<128x256xbf16> to vector<1x128x256xbf16>
    tpu.vector_store %arg6[%c0_12, %c0_13, %c0_14], %29 {strides = array<i32>} : memref<1x128x256xbf16, #tpu.memory_space<vmem>>, vector<1x128x256xbf16>,
    return
  }
  func.func @transform_0(%arg0: i32, %arg1: i32) -> (i32, i32, i32) {
    %c0_i32 = arith.constant 0 : i32
    %c0_i32_0 = arith.constant 0 : i32
    return %arg0, %arg1, %c0_i32 : i32, i32, i32
  }
  func.func @transform_1(%arg0: i32, %arg1: i32) -> (i32, i32) {
    %c0_i32 = arith.constant 0 : i32
    %c0_i32_0 = arith.constant 0 : i32
    return %arg1, %c0_i32 : i32, i32
  }
  func.func @transform_2(%arg0: i32, %arg1: i32) -> (i32, i32) {
    %c0_i32 = arith.constant 0 : i32
    %c0_i32_0 = arith.constant 0 : i32
    %c0_i32_1 = arith.constant 0 : i32
    return %c0_i32, %c0_i32_0 : i32, i32
  }
  func.func @transform_3(%arg0: i32, %arg1: i32) -> (i32, i32) {
    %c0_i32 = arith.constant 0 : i32
    %c0_i32_0 = arith.constant 0 : i32
    %c0_i32_1 = arith.constant 0 : i32
    return %c0_i32, %c0_i32_0 : i32, i32
  }
  func.func @transform_4(%arg0: i32, %arg1: i32) -> (i32, i32, i32) {
    %c0_i32 = arith.constant 0 : i32
    %c0_i32_0 = arith.constant 0 : i32
    return %arg0, %arg1, %c0_i32 : i32, i32, i32
  }
}

</mosaic_0001>

<llo_original>
// kernel: tpu_custom_call.1
$region0: #{tpu_custom_call.1}
  #allocation0 [shape = 'u32[]', space=smem, size = 0x4, offset = 0x4, fixed_abs, tag = 'smem constant byte address 0x4 - core index']
  #allocation1 [shape = 'u32[72,128]{1,0:T(1,128)}', space=vmem, size = 0x9000, scoped, tag = 'internal scratch']
  %s0 = inlined_call_operand.hbm [shape: f32[2,128,256], index: 0, kind: input, shape index: {}]
  %s1 = inlined_call_operand.hbm [shape: f32[128,256], index: 1, kind: input, shape index: {}]
  %s2 = inlined_call_operand.hbm [shape: f32[1,256], index: 2, kind: input, shape index: {}]
  %s3 = inlined_call_operand.vmem [shape: f32[1,256], index: 3, kind: input, shape index: {}]
  %s4 = inlined_call_operand.hbm [shape: bf16[2,128,256], index: 4, kind: output, shape index: {}]
  %s5 = sld [smem:[#allocation0]]
  $region61: #{tpu_custom_call.1} parent=0
    _
  %s7 = ssub.s32 1, %s5
  %s8 = scalar_select 0, %s7, %s5
  $region1: #{tpu_custom_call.1} parent=0
    #allocation2 [shape = 'u8[262144]{0}', space=vmem, size = 0x40000, scoped, tag = 'input window, operand 0']
    #allocation3 [shape = 's32[2]{0}', space=sflag, size = 0x8, scoped, tag = 'scoped memory for tpu_custom_call.1']
    #allocation4 [shape = 's32[2]{0}', space=sflag, size = 0x8, scoped, tag = 'scoped memory for tpu_custom_call.1']
    #allocation5 [shape = 'u8[131072]{0}', space=vmem, size = 0x20000, scoped, tag = 'input window, operand 1, single buffered']
    #allocation6 [shape = 's32[1]{0}', space=sflag, size = 0x4, scoped, tag = 'scoped memory for tpu_custom_call.1']
    #allocation7 [shape = 'u8[1024]{0}', space=vmem, size = 0x400, scoped, tag = 'input window, operand 2, single buffered']
    #allocation8 [shape = 'u8[131072]{0}', space=vmem, size = 0x20000, scoped, tag = 'output window, operand 0']
    %9 = vsyncpa [#allocation3], 0
    %s10 = scalar_lea.sflag [#allocation3], 1
    %11 = vsyncpa %s10, 0
    %12 = vsyncpa [#allocation6], 0
    %13 = vsyncpa [#allocation4], 0
    %s14 = scalar_lea.sflag [#allocation4], 1
    %15 = vsyncpa %s14, 0
    loop: start=0, step=1, limit=4
    $region2: #{tpu_custom_call.1} parent=1 // loop_pre_header
      _
    $region3: #{tpu_custom_call.1} parent=1 // loop_header
      %s17 = sphi 0, %s21
      %p18 = scmp.ge.s32.totalorder %s17, 4
      %s24 = sphi 0, %s36
      %s25 = sphi 0, %s32
      %s26 = sphi 0, %s24
      %s27 = sphi 0, %s25
      %s28 = sphi 0, %s26
      %s29 = sphi 0, %s27
      %s41 = sphi 0, %s43
      %s44 = sphi 0, %s41
      %s45 = sphi 0, %s44
      %s61 = sphi 0, %s45
      %s67 = sphi 0, %s69
      %s70 = sphi 0, %s67
      %s71 = sphi 0, %s70
      %s87 = sphi 0, %s71
      %s91 = sphi 0, %s91
      %s93 = sphi 0, %s91
      %s94 = sphi 0, %s93
      %s108 = sphi 0, %s94
      %s112 = sphi 0, %s112
      %s114 = sphi 0, %s112
      %s115 = sphi 0, %s114
      %s129 = sphi 0, %s115
      %s137 = sphi 0, %s139
      %s140 = sphi 0, %s137
      %s141 = sphi 0, %s140
      %s157 = sphi 0, %s141
    $region4: #{tpu_custom_call.1} parent=1 // loop_header_branch
      %20 = sbr.rel (%p18) target = $region8
    $region5: #{tpu_custom_call.1} parent=1 // loop_body
      %s22 = ssub.s32 %s17, 1
      %s23 = ssub.s32 %s17, 2
      %s30 = sadd.s32 1, %s25
      %p31 = scmp.ge.s32.totalorder %s30, 1
      %s32 = scalar_select %p31, 0, %s30
      %s33 = sadd.s32 1, %s24
      %s34 = scalar_select %p31, %s33, %s24
      %p35 = scmp.ge.s32.totalorder %s34, 2
      %s36 = scalar_select %p35, 0, %s34
      %s37 = ssub.s32 %s24, %s36
      %s38 = ssub.s32 %s25, %s32
      %s39 = sor.u32 %s37, %s38
      %p40 = scmp.eq.s32.totalorder %s39, 0
      %s42 = sadd.s32 %s41, 1
      %s43 = scalar_select %p40, %s41, %s42
      %p46 = pneg %p40
      %p47 = scmp.eq.s32.totalorder %s17, 1
      %p48 = por %p46, %p47
      %p49 = scmp.ne.s32.totalorder %s41, %s44
      %p50 = scmp.eq.s32.totalorder %s17, 0
      %p51 = por %p49, %p50
      %p52 = scmp.ne.s32.totalorder %s41, %s44
      %p53 = scmp.eq.s32.totalorder %s22, 1
      %p54 = por %p52, %p53
      %p55 = scmp.ne.s32.totalorder %s44, %s45
      %p56 = scmp.eq.s32.totalorder %s22, 0
      %p57 = por %p55, %p56
      %p58 = scmp.ne.s32.totalorder %s44, %s45
      %p59 = scmp.eq.s32.totalorder %s23, 1
      %p60 = por %p58, %p59
      %p62 = scmp.ne.s32.totalorder %s45, %s61
      %p63 = scmp.eq.s32.totalorder %s23, 0
      %p64 = por %p62, %p63
      %s65 = ssub.s32 %s25, %s32
      %p66 = scmp.eq.s32.totalorder %s65, 0
      %s68 = sadd.s32 %s67, 1
      %s69 = scalar_select %p66, %s67, %s68
      %p72 = pneg %p66
      %p73 = scmp.eq.s32.totalorder %s17, 1
      %p74 = por %p72, %p73
      %p75 = scmp.ne.s32.totalorder %s67, %s70
      %p76 = scmp.eq.s32.totalorder %s17, 0
      %p77 = por %p75, %p76
      %p78 = scmp.ne.s32.totalorder %s67, %s70
      %p79 = scmp.eq.s32.totalorder %s22, 1
      %p80 = por %p78, %p79
      %p81 = scmp.ne.s32.totalorder %s70, %s71
      %p82 = scmp.eq.s32.totalorder %s22, 0
      %p83 = por %p81, %p82
      %p84 = scmp.ne.s32.totalorder %s70, %s71
      %p85 = scmp.eq.s32.totalorder %s23, 1
      %p86 = por %p84, %p85
      %p88 = scmp.ne.s32.totalorder %s71, %s87
      %p89 = scmp.eq.s32.totalorder %s23, 0
      %p90 = por %p88, %p89
      %s92 = sadd.s32 %s91, 1
      %p95 = scmp.eq.s32.totalorder %s17, 1
      %p96 = scmp.ne.s32.totalorder %s91, %s93
      %p97 = scmp.eq.s32.totalorder %s17, 0
      %p98 = por %p96, %p97
      %p99 = scmp.ne.s32.totalorder %s91, %s93
      %p100 = scmp.eq.s32.totalorder %s22, 1
      %p101 = por %p99, %p100
      %p102 = scmp.ne.s32.totalorder %s93, %s94
      %p103 = scmp.eq.s32.totalorder %s22, 0
      %p104 = por %p102, %p103
      %p105 = scmp.ne.s32.totalorder %s93, %s94
      %p106 = scmp.eq.s32.totalorder %s23, 1
      %p107 = por %p105, %p106
      %p109 = scmp.ne.s32.totalorder %s94, %s108
      %p110 = scmp.eq.s32.totalorder %s23, 0
      %p111 = por %p109, %p110
      %s113 = sadd.s32 %s112, 1
      %p116 = scmp.eq.s32.totalorder %s17, 1
      %p117 = scmp.ne.s32.totalorder %s112, %s114
      %p118 = scmp.eq.s32.totalorder %s17, 0
      %p119 = por %p117, %p118
      %p120 = scmp.ne.s32.totalorder %s112, %s114
      %p121 = scmp.eq.s32.totalorder %s22, 1
      %p122 = por %p120, %p121
      %p123 = scmp.ne.s32.totalorder %s114, %s115
      %p124 = scmp.eq.s32.totalorder %s22, 0
      %p125 = por %p123, %p124
      %p126 = scmp.ne.s32.totalorder %s114, %s115
      %p127 = scmp.eq.s32.totalorder %s23, 1
      %p128 = por %p126, %p127
      %p130 = scmp.ne.s32.totalorder %s115, %s129
      %p131 = scmp.eq.s32.totalorder %s23, 0
      %p132 = por %p130, %p131
      %s133 = ssub.s32 %s24, %s36
      %s134 = ssub.s32 %s25, %s32
      %s135 = sor.u32 %s133, %s134
      %p136 = scmp.eq.s32.totalorder %s135, 0
      %s138 = sadd.s32 %s137, 1
      %s139 = scalar_select %p136, %s137, %s138
      %p142 = pneg %p136
      %p143 = scmp.eq.s32.totalorder %s17, 1
      %p144 = por %p142, %p143
      %p145 = scmp.ne.s32.totalorder %s137, %s140
      %p146 = scmp.eq.s32.totalorder %s17, 0
      %p147 = por %p145, %p146
      %p148 = scmp.ne.s32.totalorder %s137, %s140
      %p149 = scmp.eq.s32.totalorder %s22, 1
      %p150 = por %p148, %p149
      %p151 = scmp.ne.s32.totalorder %s140, %s141
      %p152 = scmp.eq.s32.totalorder %s22, 0
      %p153 = por %p151, %p152
      %p154 = scmp.ne.s32.totalorder %s140, %s141
      %p155 = scmp.eq.s32.totalorder %s23, 1
      %p156 = por %p154, %p155
      %p158 = scmp.ne.s32.totalorder %s141, %s157
      %p159 = scmp.eq.s32.totalorder %s23, 0
      %p160 = por %p158, %p159
      %p161 = scmp.le.s32.totalorder 1, %s17
      %p162 = scmp.lt.s32.totalorder %s17, 3
      %p163 = pnand %p161, %p162
      %p164 = pneg %p163
      // Predicated region
      $region9: #{tpu_custom_call.1} parent=5 // pred_check
        _
      $region10: #{tpu_custom_call.1} parent=5 // pred_check_branch
        %166 = sbr.rel (%p163) target = $region12
      $region11: #{tpu_custom_call.1} parent=5 // pred_region
        %s167 = ssub.s32 %s17, 1
        // Predicated region
        $region13: #{tpu_custom_call.1} parent=11 // pred_check
          %p168 = pneg %p83
        $region14: #{tpu_custom_call.1} parent=11 // pred_check_branch
          %170 = sbr.rel (%p168) target = $region16
        $region15: #{tpu_custom_call.1} parent=11 // pred_region
          %s171 = smul.u32 16, %s27
          %173 = vsyncadd [#allocation6], 0
          %s174 = smul.addr %s171, 2
          %s175 = smul.addr %s174, 8
          %s176 = scalar_lea.hbm %s1, %s175
          %s177 = sshll.u32 %s176, 4
          %s178 = int_to_ptr.hbm [resolvable:$true] %s177
          %s179 = sshll.u32 [#allocation5], 4
          %s180 = int_to_ptr.vmem [resolvable:$true] %s179
          %185 = dma.hbm_to_vmem [thread:$0]  %s178, 4096, %s180, [#allocation6], 256, 256, 16
        $region16: #{tpu_custom_call.1} parent=11 // pred_fallthru
          _
        // Predicated region
        $region17: #{tpu_custom_call.1} parent=11 // pred_check
          %p186 = pneg %p104
        $region18: #{tpu_custom_call.1} parent=11 // pred_check_branch
          %188 = sbr.rel (%p186) target = $region20
        $region19: #{tpu_custom_call.1} parent=11 // pred_region
          %190 = vsyncadd [#allocation6], 0
          %s192 = sshll.u32 %s2, 4
          %s193 = int_to_ptr.hbm [resolvable:$true] %s192
          %s194 = sshll.u32 [#allocation7], 4
          %s195 = int_to_ptr.vmem [resolvable:$true] %s194
          %197 = dma.hbm_to_vmem [thread:$0]  %s193, 32, %s195, [#allocation6]
        $region20: #{tpu_custom_call.1} parent=11 // pred_fallthru
          _
        // Predicated region
        $region21: #{tpu_custom_call.1} parent=11 // pred_check
          %p198 = pneg %p125
        $region22: #{tpu_custom_call.1} parent=11 // pred_check_branch
          %200 = sbr.rel (%p198) target = $region24
        $region23: #{tpu_custom_call.1} parent=11 // pred_region
          _
        $region24: #{tpu_custom_call.1} parent=11 // pred_fallthru
          _
      $region12: #{tpu_custom_call.1} parent=5 // pred_fallthru
        _
      %p201 = scmp.lt.s32.totalorder %s17, 2
      // Predicated region
      $region25: #{tpu_custom_call.1} parent=5 // pred_check
        %p202 = pneg %p201
      $region26: #{tpu_custom_call.1} parent=5 // pred_check_branch
        %204 = sbr.rel (%p202) target = $region28
      $region27: #{tpu_custom_call.1} parent=5 // pred_region
        // Predicated region
        $region29: #{tpu_custom_call.1} parent=27 // pred_check
          %p205 = pneg %p51
        $region30: #{tpu_custom_call.1} parent=27 // pred_check_branch
          %207 = sbr.rel (%p205) target = $region32
        $region31: #{tpu_custom_call.1} parent=27 // pred_region
          %s208 = sand.u32 %s41, 1
          %s209 = scalar_lea.sflag [#allocation3], %s208
          %s210 = sand.u32 %s41, 1
          %s211 = smul.addr %s210, 256
          %s212 = scalar_lea.vmem [#allocation2], %s211
          %s213 = smul.u32 16, %s25
          %215 = vsyncadd %s209, 0
          %s216 = smul.addr %s213, 2
          %s217 = smul.addr %s24, 32
          %s218 = sadd.s32 %s216, %s217
          %s219 = smul.addr %s218, 8
          %s220 = scalar_lea.hbm %s0, %s219
          %s221 = sshll.u32 %s220, 4
          %s222 = int_to_ptr.hbm [resolvable:$true] %s221
          %s223 = sshll.u32 %s212, 4
          %s224 = int_to_ptr.vmem [resolvable:$true] %s223
          %229 = dma.hbm_to_vmem [thread:$0]  %s222, 4096, %s224, %s209, 256, 256, 16
        $region32: #{tpu_custom_call.1} parent=27 // pred_fallthru
          _
      $region28: #{tpu_custom_call.1} parent=5 // pred_fallthru
        _
      %p230 = scmp.le.s32.totalorder 1, %s17
      %p231 = scmp.lt.s32.totalorder %s17, 3
      %p232 = pnand %p230, %p231
      %p233 = pneg %p232
      // Predicated region
      $region33: #{tpu_custom_call.1} parent=5 // pred_check
        _
      $region34: #{tpu_custom_call.1} parent=5 // pred_check_branch
        %235 = sbr.rel (%p232) target = $region36
      $region35: #{tpu_custom_call.1} parent=5 // pred_region
        %s236 = ssub.s32 %s17, 1
        %s237 = sand.u32 %s44, 1
        %s238 = scalar_lea.sflag [#allocation3], %s237
        %s239 = sand.u32 %s44, 1
        %s240 = smul.addr %s239, 256
        %s241 = scalar_lea.vmem [#allocation2], %s240
        // Predicated region
        $region37: #{tpu_custom_call.1} parent=35 // pred_check
          %p242 = pneg %p57
        $region38: #{tpu_custom_call.1} parent=35 // pred_check_branch
          %244 = sbr.rel (%p242) target = $region40
        $region39: #{tpu_custom_call.1} parent=35 // pred_region
          %246 = dma.done %s238, 4096
        $region40: #{tpu_custom_call.1} parent=35 // pred_fallthru
          _
        // Predicated region
        $region41: #{tpu_custom_call.1} parent=35 // pred_check
          %p247 = pneg %p83
        $region42: #{tpu_custom_call.1} parent=35 // pred_check_branch
          %249 = sbr.rel (%p247) target = $region44
        $region43: #{tpu_custom_call.1} parent=35 // pred_region
          %251 = dma.done [#allocation6], 4096
        $region44: #{tpu_custom_call.1} parent=35 // pred_fallthru
          _
        // Predicated region
        $region45: #{tpu_custom_call.1} parent=35 // pred_check
          %p252 = pneg %p104
        $region46: #{tpu_custom_call.1} parent=35 // pred_check_branch
          %254 = sbr.rel (%p252) target = $region48
        $region47: #{tpu_custom_call.1} parent=35 // pred_region
          %256 = dma.done [#allocation6], 32
        $region48: #{tpu_custom_call.1} parent=35 // pred_fallthru
          _
        %s257 = sand.u32 %s44, 1
        %s258 = scalar_lea.sflag [#allocation3], %s257
        %s259 = sand.u32 %s44, 1
        %s260 = smul.addr %s259, 256
        %s261 = scalar_lea.vmem [#allocation2], %s260
        %p262 = pneg %p57
        %p263 = pneg %p54
        %p264 = pneg %p83
        %p265 = pneg %p80
        %p266 = pneg %p104
        %p267 = pneg %p101
        %p268 = pneg %p125
        %p269 = pneg %p122
        %p270 = pneg %p153
        %p271 = pneg %p150
        %s272 = sand.u32 %s140, 1
        %s273 = scalar_lea.sflag [#allocation4], %s272
        %s274 = sand.u32 %s140, 1
        %s275 = smul.addr %s274, 128
        %s276 = scalar_lea.vmem [#allocation8], %s275
        %s277 = smul.u32 16, %s27
        %s278 = smul.u32 16, %s27
        %s279 = smul.u32 16, %s27
        %v280 = vld [vmem:[%s241] sm:$0xff]
        %v281 = vld [vmem:[%s241 + $0x8] sm:$0xff]
        %v282 = vld [vmem:[%s241 + $0x10] sm:$0xff]
        %v283 = vld [vmem:[%s241 + $0x18] sm:$0xff]
        %v284 = vld [vmem:[%s241 + $0x20] sm:$0xff]
        %v285 = vld [vmem:[%s241 + $0x28] sm:$0xff]
        %v286 = vld [vmem:[%s241 + $0x30] sm:$0xff]
        %v287 = vld [vmem:[%s241 + $0x38] sm:$0xff]
        %v288 = vld [vmem:[%s241 + $0x40] sm:$0xff]
        %v289 = vld [vmem:[%s241 + $0x48] sm:$0xff]
        %v290 = vld [vmem:[%s241 + $0x50] sm:$0xff]
        %v291 = vld [vmem:[%s241 + $0x58] sm:$0xff]
        %v292 = vld [vmem:[%s241 + $0x60] sm:$0xff]
        %v293 = vld [vmem:[%s241 + $0x68] sm:$0xff]
        %v294 = vld [vmem:[%s241 + $0x70] sm:$0xff]
        %v295 = vld [vmem:[%s241 + $0x78] sm:$0xff]
        %v296 = vld [vmem:[%s241 + $0x80] sm:$0xff]
        %v297 = vld [vmem:[%s241 + $0x88] sm:$0xff]
        %v298 = vld [vmem:[%s241 + $0x90] sm:$0xff]
        %v299 = vld [vmem:[%s241 + $0x98] sm:$0xff]
        %v300 = vld [vmem:[%s241 + $0xa0] sm:$0xff]
        %v301 = vld [vmem:[%s241 + $0xa8] sm:$0xff]
        %v302 = vld [vmem:[%s241 + $0xb0] sm:$0xff]
        %v303 = vld [vmem:[%s241 + $0xb8] sm:$0xff]
        %v304 = vld [vmem:[%s241 + $0xc0] sm:$0xff]
        %v305 = vld [vmem:[%s241 + $0xc8] sm:$0xff]
        %v306 = vld [vmem:[%s241 + $0xd0] sm:$0xff]
        %v307 = vld [vmem:[%s241 + $0xd8] sm:$0xff]
        %v308 = vld [vmem:[%s241 + $0xe0] sm:$0xff]
        %v309 = vld [vmem:[%s241 + $0xe8] sm:$0xff]
        %v310 = vld [vmem:[%s241 + $0xf0] sm:$0xff]
        %v311 = vld [vmem:[%s241 + $0xf8] sm:$0xff]
        %v312 = vld [vmem:[#allocation5] sm:$0xff]
        %v313 = vld [vmem:[#allocation5 + $0x8] sm:$0xff]
        %v314 = vld [vmem:[#allocation5 + $0x10] sm:$0xff]
        %v315 = vld [vmem:[#allocation5 + $0x18] sm:$0xff]
        %v316 = vld [vmem:[#allocation5 + $0x20] sm:$0xff]
        %v317 = vld [vmem:[#allocation5 + $0x28] sm:$0xff]
        %v318 = vld [vmem:[#allocation5 + $0x30] sm:$0xff]
        %v319 = vld [vmem:[#allocation5 + $0x38] sm:$0xff]
        %v320 = vld [vmem:[#allocation5 + $0x40] sm:$0xff]
        %v321 = vld [vmem:[#allocation5 + $0x48] sm:$0xff]
        %v322 = vld [vmem:[#allocation5 + $0x50] sm:$0xff]
        %v323 = vld [vmem:[#allocation5 + $0x58] sm:$0xff]
        %v324 = vld [vmem:[#allocation5 + $0x60] sm:$0xff]
        %v325 = vld [vmem:[#allocation5 + $0x68] sm:$0xff]
        %v326 = vld [vmem:[#allocation5 + $0x70] sm:$0xff]
        %v327 = vld [vmem:[#allocation5 + $0x78] sm:$0xff]
        %v328 = vld [vmem:[#allocation5 + $0x80] sm:$0xff]
        %v329 = vld [vmem:[#allocation5 + $0x88] sm:$0xff]
        %v330 = vld [vmem:[#allocation5 + $0x90] sm:$0xff]
        %v331 = vld [vmem:[#allocation5 + $0x98] sm:$0xff]
        %v332 = vld [vmem:[#allocation5 + $0xa0] sm:$0xff]
        %v333 = vld [vmem:[#allocation5 + $0xa8] sm:$0xff]
        %v334 = vld [vmem:[#allocation5 + $0xb0] sm:$0xff]
        %v335 = vld [vmem:[#allocation5 + $0xb8] sm:$0xff]
        %v336 = vld [vmem:[#allocation5 + $0xc0] sm:$0xff]
        %v337 = vld [vmem:[#allocation5 + $0xc8] sm:$0xff]
        %v338 = vld [vmem:[#allocation5 + $0xd0] sm:$0xff]
        %v339 = vld [vmem:[#allocation5 + $0xd8] sm:$0xff]
        %v340 = vld [vmem:[#allocation5 + $0xe0] sm:$0xff]
        %v341 = vld [vmem:[#allocation5 + $0xe8] sm:$0xff]
        %v342 = vld [vmem:[#allocation5 + $0xf0] sm:$0xff]
        %v343 = vld [vmem:[#allocation5 + $0xf8] sm:$0xff]
        %v344 = vadd.f32 %v280, %v312
        %v345 = vadd.f32 %v281, %v313
        %v346 = vadd.f32 %v282, %v314
        %v347 = vadd.f32 %v283, %v315
        %v348 = vadd.f32 %v284, %v316
        %v349 = vadd.f32 %v285, %v317
        %v350 = vadd.f32 %v286, %v318
        %v351 = vadd.f32 %v287, %v319
        %v352 = vadd.f32 %v288, %v320
        %v353 = vadd.f32 %v289, %v321
        %v354 = vadd.f32 %v290, %v322
        %v355 = vadd.f32 %v291, %v323
        %v356 = vadd.f32 %v292, %v324
        %v357 = vadd.f32 %v293, %v325
        %v358 = vadd.f32 %v294, %v326
        %v359 = vadd.f32 %v295, %v327
        %v360 = vadd.f32 %v296, %v328
        %v361 = vadd.f32 %v297, %v329
        %v362 = vadd.f32 %v298, %v330
        %v363 = vadd.f32 %v299, %v331
        %v364 = vadd.f32 %v300, %v332
        %v365 = vadd.f32 %v301, %v333
        %v366 = vadd.f32 %v302, %v334
        %v367 = vadd.f32 %v303, %v335
        %v368 = vadd.f32 %v304, %v336
        %v369 = vadd.f32 %v305, %v337
        %v370 = vadd.f32 %v306, %v338
        %v371 = vadd.f32 %v307, %v339
        %v372 = vadd.f32 %v308, %v340
        %v373 = vadd.f32 %v309, %v341
        %v374 = vadd.f32 %v310, %v342
        %v375 = vadd.f32 %v311, %v343
        %v376 = vadd.f32 %v344, %v345
        %377 = vadd.xlane.f32.xlu0 %v376
        %v378 = vpop.xlane.xlu0 %377
        %v379 = vadd.f32 %v346, %v347
        %380 = vadd.xlane.f32.xlu0 %v379
        %v381 = vpop.xlane.xlu0 %380
        %v382 = vadd.f32 %v348, %v349
        %383 = vadd.xlane.f32.xlu0 %v382
        %v384 = vpop.xlane.xlu0 %383
        %v385 = vadd.f32 %v350, %v351
        %386 = vadd.xlane.f32.xlu0 %v385
        %v387 = vpop.xlane.xlu0 %386
        %v388 = vadd.f32 %v352, %v353
        %389 = vadd.xlane.f32.xlu0 %v388
        %v390 = vpop.xlane.xlu0 %389
        %v391 = vadd.f32 %v354, %v355
        %392 = vadd.xlane.f32.xlu0 %v391
        %v393 = vpop.xlane.xlu0 %392
        %v394 = vadd.f32 %v356, %v357
        %395 = vadd.xlane.f32.xlu0 %v394
        %v396 = vpop.xlane.xlu0 %395
        %v397 = vadd.f32 %v358, %v359
        %398 = vadd.xlane.f32.xlu0 %v397
        %v399 = vpop.xlane.xlu0 %398
        %v400 = vadd.f32 %v360, %v361
        %401 = vadd.xlane.f32.xlu0 %v400
        %v402 = vpop.xlane.xlu0 %401
        %v403 = vadd.f32 %v362, %v363
        %404 = vadd.xlane.f32.xlu0 %v403
        %v405 = vpop.xlane.xlu0 %404
        %v406 = vadd.f32 %v364, %v365
        %407 = vadd.xlane.f32.xlu0 %v406
        %v408 = vpop.xlane.xlu0 %407
        %v409 = vadd.f32 %v366, %v367
        %410 = vadd.xlane.f32.xlu0 %v409
        %v411 = vpop.xlane.xlu0 %410
        %v412 = vadd.f32 %v368, %v369
        %413 = vadd.xlane.f32.xlu0 %v412
        %v414 = vpop.xlane.xlu0 %413
        %v415 = vadd.f32 %v370, %v371
        %416 = vadd.xlane.f32.xlu0 %v415
        %v417 = vpop.xlane.xlu0 %416
        %v418 = vadd.f32 %v372, %v373
        %419 = vadd.xlane.f32.xlu0 %v418
        %v420 = vpop.xlane.xlu0 %419
        %v421 = vadd.f32 %v374, %v375
        %422 = vadd.xlane.f32.xlu0 %v421
        %v423 = vpop.xlane.xlu0 %422
        %v424 = vrcp.pop 256.0
        %v425 = vmul.f32 256.0, %v424
        %v426 = vsub.f32 1.0, %v425
        %v427 = vmul.f32 %v424, %v426
        %v428 = vadd.f32 %v424, %v427
        %vm429 = vweird.f32 %v424
        %v430 = vsel %vm429, %v424, %v428
        %v431 = vmul.f32 %v378, %v430
        %v432 = vmul.f32 %v381, %v430
        %v433 = vmul.f32 %v384, %v430
        %v434 = vmul.f32 %v387, %v430
        %v435 = vmul.f32 %v390, %v430
        %v436 = vmul.f32 %v393, %v430
        %v437 = vmul.f32 %v396, %v430
        %v438 = vmul.f32 %v399, %v430
        %v439 = vmul.f32 %v402, %v430
        %v440 = vmul.f32 %v405, %v430
        %v441 = vmul.f32 %v408, %v430
        %v442 = vmul.f32 %v411, %v430
        %v443 = vmul.f32 %v414, %v430
        %v444 = vmul.f32 %v417, %v430
        %v445 = vmul.f32 %v420, %v430
        %v446 = vmul.f32 %v423, %v430
        %v447 = vsub.f32 %v344, %v431
        %v448 = vsub.f32 %v345, %v431
        %v449 = vsub.f32 %v346, %v432
        %v450 = vsub.f32 %v347, %v432
        %v451 = vsub.f32 %v348, %v433
        %v452 = vsub.f32 %v349, %v433
        %v453 = vsub.f32 %v350, %v434
        %v454 = vsub.f32 %v351, %v434
        %v455 = vsub.f32 %v352, %v435
        %v456 = vsub.f32 %v353, %v435
        %v457 = vsub.f32 %v354, %v436
        %v458 = vsub.f32 %v355, %v436
        %v459 = vsub.f32 %v356, %v437
        %v460 = vsub.f32 %v357, %v437
        %v461 = vsub.f32 %v358, %v438
        %v462 = vsub.f32 %v359, %v438
        %v463 = vsub.f32 %v360, %v439
        %v464 = vsub.f32 %v361, %v439
        %v465 = vsub.f32 %v362, %v440
        %v466 = vsub.f32 %v363, %v440
        %v467 = vsub.f32 %v364, %v441
        %v468 = vsub.f32 %v365, %v441
        %v469 = vsub.f32 %v366, %v442
        %v470 = vsub.f32 %v367, %v442
        %v471 = vsub.f32 %v368, %v443
        %v472 = vsub.f32 %v369, %v443
        %v473 = vsub.f32 %v370, %v444
        %v474 = vsub.f32 %v371, %v444
        %v475 = vsub.f32 %v372, %v445
        %v476 = vsub.f32 %v373, %v445
        %v477 = vsub.f32 %v374, %v446
        %v478 = vsub.f32 %v375, %v446
        %v479 = vmul.f32 %v447, %v447
        %v480 = vmul.f32 %v448, %v448
        %v481 = vmul.f32 %v449, %v449
        %v482 = vmul.f32 %v450, %v450
        %v483 = vmul.f32 %v451, %v451
        %v484 = vmul.f32 %v452, %v452
        %v485 = vmul.f32 %v453, %v453
        %v486 = vmul.f32 %v454, %v454
        %v487 = vmul.f32 %v455, %v455
        %v488 = vmul.f32 %v456, %v456
        %v489 = vmul.f32 %v457, %v457
        %v490 = vmul.f32 %v458, %v458
        %v491 = vmul.f32 %v459, %v459
        %v492 = vmul.f32 %v460, %v460
        %v493 = vmul.f32 %v461, %v461
        %v494 = vmul.f32 %v462, %v462
        %v495 = vmul.f32 %v463, %v463
        %v496 = vmul.f32 %v464, %v464
        %v497 = vmul.f32 %v465, %v465
        %v498 = vmul.f32 %v466, %v466
        %v499 = vmul.f32 %v467, %v467
        %v500 = vmul.f32 %v468, %v468
        %v501 = vmul.f32 %v469, %v469
        %v502 = vmul.f32 %v470, %v470
        %v503 = vmul.f32 %v471, %v471
        %v504 = vmul.f32 %v472, %v472
        %v505 = vmul.f32 %v473, %v473
        %v506 = vmul.f32 %v474, %v474
        %v507 = vmul.f32 %v475, %v475
        %v508 = vmul.f32 %v476, %v476
        %v509 = vmul.f32 %v477, %v477
        %v510 = vmul.f32 %v478, %v478
        %v511 = vadd.f32 %v479, %v480
        %512 = vadd.xlane.f32.xlu0 %v511
        %v513 = vpop.xlane.xlu0 %512
        %v514 = vadd.f32 %v481, %v482
        %515 = vadd.xlane.f32.xlu0 %v514
        %v516 = vpop.xlane.xlu0 %515
        %v517 = vadd.f32 %v483, %v484
        %518 = vadd.xlane.f32.xlu0 %v517
        %v519 = vpop.xlane.xlu0 %518
        %v520 = vadd.f32 %v485, %v486
        %521 = vadd.xlane.f32.xlu0 %v520
        %v522 = vpop.xlane.xlu0 %521
        %v523 = vadd.f32 %v487, %v488
        %524 = vadd.xlane.f32.xlu0 %v523
        %v525 = vpop.xlane.xlu0 %524
        %v526 = vadd.f32 %v489, %v490
        %527 = vadd.xlane.f32.xlu0 %v526
        %v528 = vpop.xlane.xlu0 %527
        %v529 = vadd.f32 %v491, %v492
        %530 = vadd.xlane.f32.xlu0 %v529
        %v531 = vpop.xlane.xlu0 %530
        %v532 = vadd.f32 %v493, %v494
        %533 = vadd.xlane.f32.xlu0 %v532
        %v534 = vpop.xlane.xlu0 %533
        %v535 = vadd.f32 %v495, %v496
        %536 = vadd.xlane.f32.xlu0 %v535
        %v537 = vpop.xlane.xlu0 %536
        %v538 = vadd.f32 %v497, %v498
        %539 = vadd.xlane.f32.xlu0 %v538
        %v540 = vpop.xlane.xlu0 %539
        %v541 = vadd.f32 %v499, %v500
        %542 = vadd.xlane.f32.xlu0 %v541
        %v543 = vpop.xlane.xlu0 %542
        %v544 = vadd.f32 %v501, %v502
        %545 = vadd.xlane.f32.xlu0 %v544
        %v546 = vpop.xlane.xlu0 %545
        %v547 = vadd.f32 %v503, %v504
        %548 = vadd.xlane.f32.xlu0 %v547
        %v549 = vpop.xlane.xlu0 %548
        %v550 = vadd.f32 %v505, %v506
        %551 = vadd.xlane.f32.xlu0 %v550
        %v552 = vpop.xlane.xlu0 %551
        %v553 = vadd.f32 %v507, %v508
        %554 = vadd.xlane.f32.xlu0 %v553
        %v555 = vpop.xlane.xlu0 %554
        %v556 = vadd.f32 %v509, %v510
        %557 = vadd.xlane.f32.xlu0 %v556
        %v558 = vpop.xlane.xlu0 %557
        %v559 = vmul.f32 %v513, %v430
        %v560 = vmul.f32 %v516, %v430
        %v561 = vmul.f32 %v519, %v430
        %v562 = vmul.f32 %v522, %v430
        %v563 = vmul.f32 %v525, %v430
        %v564 = vmul.f32 %v528, %v430
        %v565 = vmul.f32 %v531, %v430
        %v566 = vmul.f32 %v534, %v430
        %v567 = vmul.f32 %v537, %v430
        %v568 = vmul.f32 %v540, %v430
        %v569 = vmul.f32 %v543, %v430
        %v570 = vmul.f32 %v546, %v430
        %v571 = vmul.f32 %v549, %v430
        %v572 = vmul.f32 %v552, %v430
        %v573 = vmul.f32 %v555, %v430
        %v574 = vmul.f32 %v558, %v430
        %v575 = vadd.f32 %v559, 1e-12
        %v576 = vadd.f32 %v560, 1e-12
        %v577 = vadd.f32 %v561, 1e-12
        %v578 = vadd.f32 %v562, 1e-12
        %v579 = vadd.f32 %v563, 1e-12
        %v580 = vadd.f32 %v564, 1e-12
        %v581 = vadd.f32 %v565, 1e-12
        %v582 = vadd.f32 %v566, 1e-12
        %v583 = vadd.f32 %v567, 1e-12
        %v584 = vadd.f32 %v568, 1e-12
        %v585 = vadd.f32 %v569, 1e-12
        %v586 = vadd.f32 %v570, 1e-12
        %v587 = vadd.f32 %v571, 1e-12
        %v588 = vadd.f32 %v572, 1e-12
        %v589 = vadd.f32 %v573, 1e-12
        %v590 = vadd.f32 %v574, 1e-12
        %v591 = vrsqrt.pop %v575
        %v592 = vmul.f32 %v591, %v575
        %v593 = vmul.f32 %v592, %v591
        %v594 = vmul.f32 0.5, %v593
        %v595 = vsub.f32 1.5, %v594
        %v596 = vmul.f32 %v591, %v595
        %vm597 = vweird.f32 %v575
        %vm598 = vweird.f32 %v591
        %vm599 = vmor %vm597, %vm598
        %v600 = vsel %vm599, %v591, %v596
        %v601 = vrsqrt.pop %v576
        %v602 = vmul.f32 %v601, %v576
        %v603 = vmul.f32 %v602, %v601
        %v604 = vmul.f32 0.5, %v603
        %v605 = vsub.f32 1.5, %v604
        %v606 = vmul.f32 %v601, %v605
        %vm607 = vweird.f32 %v576
        %vm608 = vweird.f32 %v601
        %vm609 = vmor %vm607, %vm608
        %v610 = vsel %vm609, %v601, %v606
        %v611 = vrsqrt.pop %v577
        %v612 = vmul.f32 %v611, %v577
        %v613 = vmul.f32 %v612, %v611
        %v614 = vmul.f32 0.5, %v613
        %v615 = vsub.f32 1.5, %v614
        %v616 = vmul.f32 %v611, %v615
        %vm617 = vweird.f32 %v577
        %vm618 = vweird.f32 %v611
        %vm619 = vmor %vm617, %vm618
        %v620 = vsel %vm619, %v611, %v616
        %v621 = vrsqrt.pop %v578
        %v622 = vmul.f32 %v621, %v578
        %v623 = vmul.f32 %v622, %v621
        %v624 = vmul.f32 0.5, %v623
        %v625 = vsub.f32 1.5, %v624
        %v626 = vmul.f32 %v621, %v625
        %vm627 = vweird.f32 %v578
        %vm628 = vweird.f32 %v621
        %vm629 = vmor %vm627, %vm628
        %v630 = vsel %vm629, %v621, %v626
        %v631 = vrsqrt.pop %v579
        %v632 = vmul.f32 %v631, %v579
        %v633 = vmul.f32 %v632, %v631
        %v634 = vmul.f32 0.5, %v633
        %v635 = vsub.f32 1.5, %v634
        %v636 = vmul.f32 %v631, %v635
        %vm637 = vweird.f32 %v579
        %vm638 = vweird.f32 %v631
        %vm639 = vmor %vm637, %vm638
        %v640 = vsel %vm639, %v631, %v636
        %v641 = vrsqrt.pop %v580
        %v642 = vmul.f32 %v641, %v580
        %v643 = vmul.f32 %v642, %v641
        %v644 = vmul.f32 0.5, %v643
        %v645 = vsub.f32 1.5, %v644
        %v646 = vmul.f32 %v641, %v645
        %vm647 = vweird.f32 %v580
        %vm648 = vweird.f32 %v641
        %vm649 = vmor %vm647, %vm648
        %v650 = vsel %vm649, %v641, %v646
        %v651 = vrsqrt.pop %v581
        %v652 = vmul.f32 %v651, %v581
        %v653 = vmul.f32 %v652, %v651
        %v654 = vmul.f32 0.5, %v653
        %v655 = vsub.f32 1.5, %v654
        %v656 = vmul.f32 %v651, %v655
        %vm657 = vweird.f32 %v581
        %vm658 = vweird.f32 %v651
        %vm659 = vmor %vm657, %vm658
        %v660 = vsel %vm659, %v651, %v656
        %v661 = vrsqrt.pop %v582
        %v662 = vmul.f32 %v661, %v582
        %v663 = vmul.f32 %v662, %v661
        %v664 = vmul.f32 0.5, %v663
        %v665 = vsub.f32 1.5, %v664
        %v666 = vmul.f32 %v661, %v665
        %vm667 = vweird.f32 %v582
        %vm668 = vweird.f32 %v661
        %vm669 = vmor %vm667, %vm668
        %v670 = vsel %vm669, %v661, %v666
        %v671 = vrsqrt.pop %v583
        %v672 = vmul.f32 %v671, %v583
        %v673 = vmul.f32 %v672, %v671
        %v674 = vmul.f32 0.5, %v673
        %v675 = vsub.f32 1.5, %v674
        %v676 = vmul.f32 %v671, %v675
        %vm677 = vweird.f32 %v583
        %vm678 = vweird.f32 %v671
        %vm679 = vmor %vm677, %vm678
        %v680 = vsel %vm679, %v671, %v676
        %v681 = vrsqrt.pop %v584
        %v682 = vmul.f32 %v681, %v584
        %v683 = vmul.f32 %v682, %v681
        %v684 = vmul.f32 0.5, %v683
        %v685 = vsub.f32 1.5, %v684
        %v686 = vmul.f32 %v681, %v685
        %vm687 = vweird.f32 %v584
        %vm688 = vweird.f32 %v681
        %vm689 = vmor %vm687, %vm688
        %v690 = vsel %vm689, %v681, %v686
        %v691 = vrsqrt.pop %v585
        %v692 = vmul.f32 %v691, %v585
        %v693 = vmul.f32 %v692, %v691
        %v694 = vmul.f32 0.5, %v693
        %v695 = vsub.f32 1.5, %v694
        %v696 = vmul.f32 %v691, %v695
        %vm697 = vweird.f32 %v585
        %vm698 = vweird.f32 %v691
        %vm699 = vmor %vm697, %vm698
        %v700 = vsel %vm699, %v691, %v696
        %v701 = vrsqrt.pop %v586
        %v702 = vmul.f32 %v701, %v586
        %v703 = vmul.f32 %v702, %v701
        %v704 = vmul.f32 0.5, %v703
        %v705 = vsub.f32 1.5, %v704
        %v706 = vmul.f32 %v701, %v705
        %vm707 = vweird.f32 %v586
        %vm708 = vweird.f32 %v701
        %vm709 = vmor %vm707, %vm708
        %v710 = vsel %vm709, %v701, %v706
        %v711 = vrsqrt.pop %v587
        %v712 = vmul.f32 %v711, %v587
        %v713 = vmul.f32 %v712, %v711
        %v714 = vmul.f32 0.5, %v713
        %v715 = vsub.f32 1.5, %v714
        %v716 = vmul.f32 %v711, %v715
        %vm717 = vweird.f32 %v587
        %vm718 = vweird.f32 %v711
        %vm719 = vmor %vm717, %vm718
        %v720 = vsel %vm719, %v711, %v716
        %v721 = vrsqrt.pop %v588
        %v722 = vmul.f32 %v721, %v588
        %v723 = vmul.f32 %v722, %v721
        %v724 = vmul.f32 0.5, %v723
        %v725 = vsub.f32 1.5, %v724
        %v726 = vmul.f32 %v721, %v725
        %vm727 = vweird.f32 %v588
        %vm728 = vweird.f32 %v721
        %vm729 = vmor %vm727, %vm728
        %v730 = vsel %vm729, %v721, %v726
        %v731 = vrsqrt.pop %v589
        %v732 = vmul.f32 %v731, %v589
        %v733 = vmul.f32 %v732, %v731
        %v734 = vmul.f32 0.5, %v733
        %v735 = vsub.f32 1.5, %v734
        %v736 = vmul.f32 %v731, %v735
        %vm737 = vweird.f32 %v589
        %vm738 = vweird.f32 %v731
        %vm739 = vmor %vm737, %vm738
        %v740 = vsel %vm739, %v731, %v736
        %v741 = vrsqrt.pop %v590
        %v742 = vmul.f32 %v741, %v590
        %v743 = vmul.f32 %v742, %v741
        %v744 = vmul.f32 0.5, %v743
        %v745 = vsub.f32 1.5, %v744
        %v746 = vmul.f32 %v741, %v745
        %vm747 = vweird.f32 %v590
        %vm748 = vweird.f32 %v741
        %vm749 = vmor %vm747, %vm748
        %v750 = vsel %vm749, %v741, %v746
        %v751 = vmul.f32 %v447, %v600
        %v752 = vmul.f32 %v448, %v600
        %v753 = vmul.f32 %v449, %v610
        %v754 = vmul.f32 %v450, %v610
        %v755 = vmul.f32 %v451, %v620
        %v756 = vmul.f32 %v452, %v620
        %v757 = vmul.f32 %v453, %v630
        %v758 = vmul.f32 %v454, %v630
        %v759 = vmul.f32 %v455, %v640
        %v760 = vmul.f32 %v456, %v640
        %v761 = vmul.f32 %v457, %v650
        %v762 = vmul.f32 %v458, %v650
        %v763 = vmul.f32 %v459, %v660
        %v764 = vmul.f32 %v460, %v660
        %v765 = vmul.f32 %v461, %v670
        %v766 = vmul.f32 %v462, %v670
        %v767 = vmul.f32 %v463, %v680
        %v768 = vmul.f32 %v464, %v680
        %v769 = vmul.f32 %v465, %v690
        %v770 = vmul.f32 %v466, %v690
        %v771 = vmul.f32 %v467, %v700
        %v772 = vmul.f32 %v468, %v700
        %v773 = vmul.f32 %v469, %v710
        %v774 = vmul.f32 %v470, %v710
        %v775 = vmul.f32 %v471, %v720
        %v776 = vmul.f32 %v472, %v720
        %v777 = vmul.f32 %v473, %v730
        %v778 = vmul.f32 %v474, %v730
        %v779 = vmul.f32 %v475, %v740
        %v780 = vmul.f32 %v476, %v740
        %v781 = vmul.f32 %v477, %v750
        %v782 = vmul.f32 %v478, %v750
        %v783 = vld [vmem:[#allocation7] sm:$0x3]
        %v785 = vperm.slane %v783, 0
        %v786 = vperm.slane %v783, 1
        %v789 = vmul.f32 %v751, %v785
        %v790 = vmul.f32 %v752, %v786
        %v791 = vmul.f32 %v753, %v785
        %v792 = vmul.f32 %v754, %v786
        %v793 = vmul.f32 %v755, %v785
        %v794 = vmul.f32 %v756, %v786
        %v795 = vmul.f32 %v757, %v785
        %v796 = vmul.f32 %v758, %v786
        %v797 = vmul.f32 %v759, %v785
        %v798 = vmul.f32 %v760, %v786
        %v799 = vmul.f32 %v761, %v785
        %v800 = vmul.f32 %v762, %v786
        %v801 = vmul.f32 %v763, %v785
        %v802 = vmul.f32 %v764, %v786
        %v803 = vmul.f32 %v765, %v785
        %v804 = vmul.f32 %v766, %v786
        %v805 = vmul.f32 %v767, %v785
        %v806 = vmul.f32 %v768, %v786
        %v807 = vmul.f32 %v769, %v785
        %v808 = vmul.f32 %v770, %v786
        %v809 = vmul.f32 %v771, %v785
        %v810 = vmul.f32 %v772, %v786
        %v811 = vmul.f32 %v773, %v785
        %v812 = vmul.f32 %v774, %v786
        %v813 = vmul.f32 %v775, %v785
        %v814 = vmul.f32 %v776, %v786
        %v815 = vmul.f32 %v777, %v785
        %v816 = vmul.f32 %v778, %v786
        %v817 = vmul.f32 %v779, %v785
        %v818 = vmul.f32 %v780, %v786
        %v819 = vmul.f32 %v781, %v785
        %v820 = vmul.f32 %v782, %v786
        %v821 = vld [vmem:[%s3] sm:$0x3]
        %v823 = vperm.slane %v821, 0
        %v824 = vperm.slane %v821, 1
        %v827 = vadd.f32 %v789, %v823
        %v828 = vadd.f32 %v790, %v824
        %v829 = vadd.f32 %v791, %v823
        %v830 = vadd.f32 %v792, %v824
        %v831 = vadd.f32 %v793, %v823
        %v832 = vadd.f32 %v794, %v824
        %v833 = vadd.f32 %v795, %v823
        %v834 = vadd.f32 %v796, %v824
        %v835 = vadd.f32 %v797, %v823
        %v836 = vadd.f32 %v798, %v824
        %v837 = vadd.f32 %v799, %v823
        %v838 = vadd.f32 %v800, %v824
        %v839 = vadd.f32 %v801, %v823
        %v840 = vadd.f32 %v802, %v824
        %v841 = vadd.f32 %v803, %v823
        %v842 = vadd.f32 %v804, %v824
        %v843 = vadd.f32 %v805, %v823
        %v844 = vadd.f32 %v806, %v824
        %v845 = vadd.f32 %v807, %v823
        %v846 = vadd.f32 %v808, %v824
        %v847 = vadd.f32 %v809, %v823
        %v848 = vadd.f32 %v810, %v824
        %v849 = vadd.f32 %v811, %v823
        %v850 = vadd.f32 %v812, %v824
        %v851 = vadd.f32 %v813, %v823
        %v852 = vadd.f32 %v814, %v824
        %v853 = vadd.f32 %v815, %v823
        %v854 = vadd.f32 %v816, %v824
        %v855 = vadd.f32 %v817, %v823
        %v856 = vadd.f32 %v818, %v824
        %v857 = vadd.f32 %v819, %v823
        %v858 = vadd.f32 %v820, %v824
        %v859 = vpack.c.bf16 %v828, %v827
        %v860 = vpack.c.bf16 %v830, %v829
        %v861 = vpack.c.bf16 %v832, %v831
        %v862 = vpack.c.bf16 %v834, %v833
        %v863 = vpack.c.bf16 %v836, %v835
        %v864 = vpack.c.bf16 %v838, %v837
        %v865 = vpack.c.bf16 %v840, %v839
        %v866 = vpack.c.bf16 %v842, %v841
        %v867 = vpack.c.bf16 %v844, %v843
        %v868 = vpack.c.bf16 %v846, %v845
        %v869 = vpack.c.bf16 %v848, %v847
        %v870 = vpack.c.bf16 %v850, %v849
        %v871 = vpack.c.bf16 %v852, %v851
        %v872 = vpack.c.bf16 %v854, %v853
        %v873 = vpack.c.bf16 %v856, %v855
        %v874 = vpack.c.bf16 %v858, %v857
        %875 = vst [vmem:[%s276] sm:$0xff] %v859
        %876 = vst [vmem:[%s276 + $0x8] sm:$0xff] %v860
        %877 = vst [vmem:[%s276 + $0x10] sm:$0xff] %v861
        %878 = vst [vmem:[%s276 + $0x18] sm:$0xff] %v862
        %879 = vst [vmem:[%s276 + $0x20] sm:$0xff] %v863
        %880 = vst [vmem:[%s276 + $0x28] sm:$0xff] %v864
        %881 = vst [vmem:[%s276 + $0x30] sm:$0xff] %v865
        %882 = vst [vmem:[%s276 + $0x38] sm:$0xff] %v866
        %883 = vst [vmem:[%s276 + $0x40] sm:$0xff] %v867
        %884 = vst [vmem:[%s276 + $0x48] sm:$0xff] %v868
        %885 = vst [vmem:[%s276 + $0x50] sm:$0xff] %v869
        %886 = vst [vmem:[%s276 + $0x58] sm:$0xff] %v870
        %887 = vst [vmem:[%s276 + $0x60] sm:$0xff] %v871
        %888 = vst [vmem:[%s276 + $0x68] sm:$0xff] %v872
        %889 = vst [vmem:[%s276 + $0x70] sm:$0xff] %v873
        %890 = vst [vmem:[%s276 + $0x78] sm:$0xff] %v874
        %s891 = sand.u32 %s140, 1
        %s892 = scalar_lea.sflag [#allocation4], %s891
        %s893 = sand.u32 %s140, 1
        %s894 = smul.addr %s893, 128
        %s895 = scalar_lea.vmem [#allocation8], %s894
        // Predicated region
        $region49: #{tpu_custom_call.1} parent=35 // pred_check
          %p896 = pneg %p150
        $region50: #{tpu_custom_call.1} parent=35 // pred_check_branch
          %898 = sbr.rel (%p896) target = $region52
        $region51: #{tpu_custom_call.1} parent=35 // pred_region
          %s899 = smul.u32 16, %s27
          %901 = vsyncadd %s892, 0
          %s902 = smul.addr %s899, 2
          %s903 = smul.addr %s26, 32
          %s904 = sadd.s32 %s902, %s903
          %s905 = smul.addr %s904, 4
          %s906 = scalar_lea.hbm %s4, %s905
          %s907 = sshll.u32 %s895, 4
          %s908 = int_to_ptr.vmem [resolvable:$true] %s907
          %s909 = sshll.u32 %s906, 4
          %s910 = int_to_ptr.hbm [resolvable:$true] %s909
          %915 = dma.vmem_to_hbm [thread:$0]  %s908, 2048, %s910, %s892, 128, 128, 8
        $region52: #{tpu_custom_call.1} parent=35 // pred_fallthru
          _
      $region36: #{tpu_custom_call.1} parent=5 // pred_fallthru
        _
      %p916 = scmp.le.s32.totalorder 2, %s17
      // Predicated region
      $region53: #{tpu_custom_call.1} parent=5 // pred_check
        %p917 = pneg %p916
      $region54: #{tpu_custom_call.1} parent=5 // pred_check_branch
        %919 = sbr.rel (%p917) target = $region56
      $region55: #{tpu_custom_call.1} parent=5 // pred_region
        %s920 = ssub.s32 %s17, 2
        // Predicated region
        $region57: #{tpu_custom_call.1} parent=55 // pred_check
          %p921 = pneg %p156
        $region58: #{tpu_custom_call.1} parent=55 // pred_check_branch
          %923 = sbr.rel (%p921) target = $region60
        $region59: #{tpu_custom_call.1} parent=55 // pred_region
          %s924 = sand.u32 %s141, 1
          %s925 = scalar_lea.sflag [#allocation4], %s924
          %s926 = sand.u32 %s141, 1
          %s927 = smul.addr %s926, 128
          %s928 = scalar_lea.vmem [#allocation8], %s927
          %930 = dma.done %s925, 2048
        $region60: #{tpu_custom_call.1} parent=55 // pred_fallthru
          _
      $region56: #{tpu_custom_call.1} parent=5 // pred_fallthru
        _
    $region6: #{tpu_custom_call.1} parent=1 // loop_footer
      %s21 = sadd.s32 1, %s17
    $region7: #{tpu_custom_call.1} parent=1 // loop_footer_branch
      %16 = sbr.rel target = $region3
    $region8: #{tpu_custom_call.1} parent=1 // loop_exit
      _
    %931 = vsyncpa [#allocation3], 1
    %s932 = scalar_lea.sflag [#allocation3], 1
    %933 = vsyncpa %s932, 1
    %934 = vsyncpa [#allocation6], 1
    %935 = vsyncpa [#allocation4], 1
    %s936 = scalar_lea.sflag [#allocation4], 1
    %937 = vsyncpa %s936, 1

</llo_original>
